<compile_context>
chip_gen: v7x
topology: tpu7x:2x2x1
jax: 0.10.0
libtpu: 0.0.40
codegen_flags: <defaults>
</compile_context>

<pallas_src>
import numpy as np
import jax
import jax.numpy as jnp
from jax import lax
from jax.experimental import pallas as pl
from jax.experimental.pallas import tpu as pltpu


# ------------------------------ Pallas kernel ------------------------------

def _grad_mag_kernel(xp_ref, o_ref):
    # xp_ref: (1, H+2, W+2) zero-padded channel-0 image for one batch item.
    xp = xp_ref[0]                                   # (H+2, W+2), one VMEM load
    # F.conv2d (cross-correlation) with the two-tap kernels reduces to
    # central differences on the padded image:
    #   gv[i,j] = x[i+1,j] - x[i-1,j],  gh[i,j] = x[i,j+1] - x[i,j-1]
    gv = xp[2:, 1:-1] - xp[:-2, 1:-1]                # vertical gradient
    gh = xp[1:-1, 2:] - xp[1:-1, :-2]                # horizontal gradient
    o_ref[0, :, :] = jnp.sqrt(gv * gv + gh * gh + jnp.float32(1e-6))


def get_gradient_nopadding(x):
    """x: (N, C, H, W) float32 -> (N, 1, H, W), matching the torch module."""
    n, _, h, w = x.shape
    x0 = x[:, 0, :, :]                               # channel 0, (N, H, W)
    xpad = jnp.pad(x0, ((0, 0), (1, 1), (1, 1)))     # padding=1, (N, H+2, W+2)
    out = pl.pallas_call(
        _grad_mag_kernel,
        out_shape=jax.ShapeDtypeStruct((n, h, w), jnp.float32),
        grid=(n,),
        # Block spatial dims equal the full array dims, so the (8,128)
        # divisibility rule is satisfied for arbitrary H, W.
        in_specs=[pl.BlockSpec((1, h + 2, w + 2), lambda i: (i, 0, 0))],
        out_specs=pl.BlockSpec((1, h, w), lambda i: (i, 0, 0)),
        compiler_params=pltpu.CompilerParams(
            dimension_semantics=("parallel",)),
    )(xpad)
    return out[:, None, :, :]                        # (N, 1, H, W)


# --------------------------- pure-JAX reference ----------------------------

def _ref_forward(x):
    kv = jnp.array([[0., -1., 0.], [0., 0., 0.], [0., 1., 0.]], jnp.float32)
    kh = jnp.array([[0., 0., 0.], [-1., 0., 1.], [0., 0., 0.]], jnp.float32)
    x0 = x[:, 0:1]                                   # (N, 1, H, W)
    conv = lambda inp, k: lax.conv_general_dilated(
        inp, k[None, None], (1, 1), [(1, 1), (1, 1)],
        dimension_numbers=("NCHW", "OIHW", "NCHW"),
        precision=lax.Precision.HIGHEST)
    gv = conv(x0, kv)
    gh = conv(x0, kh)
    return jnp.sqrt(gv * gv + gh * gh + 1e-6)


# ---------------------------------- main -----------------------------------

if __name__ == "__main__":
    key = jax.random.PRNGKey(0)
    x = jax.random.normal(key, (2, 4, 16, 16), jnp.float32)   # NCHW like torch

    out = jax.jit(get_gradient_nopadding)(x)
    jax.block_until_ready(out)
    assert out.shape == (2, 1, 16, 16)

    ref = _ref_forward(x)
    np.testing.assert_allclose(np.asarray(out), np.asarray(ref),
                               rtol=1e-5, atol=1e-5)

    print("KERNEL_OK")
</pallas_src>

<mosaic_0001>
module attributes {stable_mosaic.version = 11 : i64} {
  func.func @_grad_mag_kernel(%arg0: i32, %arg1: memref<1x18x18xf32, #tpu.memory_space<vmem>>, %arg2: memref<1x16x16xf32, #tpu.memory_space<vmem>>) attributes {dimension_semantics = [#tpu.dimension_semantics<parallel>], iteration_bounds = array<i64: 2>, scalar_prefetch = 0 : i64, scratch_operands = 0 : i64, tpu.core_type = #tpu.core_type<tc>, window_params = [{transform_indices = @transform_0, window_bounds = array<i64: 1, 18, 18>}, {transform_indices = @transform_1, window_bounds = array<i64: 1, 16, 16>}]} {
    %c0 = arith.constant 0 : index
    %c0_0 = arith.constant 0 : index
    %c0_1 = arith.constant 0 : index
    %0 = vector.load %arg1[%c0, %c0_0, %c0_1] : memref<1x18x18xf32, #tpu.memory_space<vmem>>, vector<1x18x18xf32>
    %1 = vector.shape_cast %0 : vector<1x18x18xf32> to vector<18x18xf32>
    %2 = vector.extract_strided_slice %1 {offsets = [2, 1], sizes = [16, 16], strides = [1, 1]} : vector<18x18xf32> to vector<16x16xf32>
    %3 = vector.extract_strided_slice %1 {offsets = [0, 1], sizes = [16, 16], strides = [1, 1]} : vector<18x18xf32> to vector<16x16xf32>
    %4 = arith.subf %2, %3 : vector<16x16xf32>
    %5 = vector.extract_strided_slice %1 {offsets = [1, 2], sizes = [16, 16], strides = [1, 1]} : vector<18x18xf32> to vector<16x16xf32>
    %6 = vector.extract_strided_slice %1 {offsets = [1, 0], sizes = [16, 16], strides = [1, 1]} : vector<18x18xf32> to vector<16x16xf32>
    %7 = arith.subf %5, %6 : vector<16x16xf32>
    %8 = arith.mulf %4, %4 : vector<16x16xf32>
    %9 = arith.mulf %7, %7 : vector<16x16xf32>
    %10 = arith.addf %8, %9 : vector<16x16xf32>
    %cst = arith.constant 9.99999997E-7 : f32
    %11 = vector.broadcast %cst : f32 to vector<16x16xf32>
    %12 = arith.addf %10, %11 : vector<16x16xf32>
    %13 = math.sqrt %12 : vector<16x16xf32>
    %c0_2 = arith.constant 0 : index
    %c0_3 = arith.constant 0 : index
    %c0_4 = arith.constant 0 : index
    %14 = vector.load %arg2[%c0_2, %c0_3, %c0_4] : memref<1x16x16xf32, #tpu.memory_space<vmem>>, vector<1x16x16xf32>
    %15 = vector.shape_cast %14 : vector<1x16x16xf32> to vector<16x16xf32>
    %16 = vector.shape_cast %13 : vector<16x16xf32> to vector<1x16x16xf32>
    tpu.vector_store %arg2[%c0_2, %c0_3, %c0_4], %16 {strides = array<i32>} : memref<1x16x16xf32, #tpu.memory_space<vmem>>, vector<1x16x16xf32>,
    return
  }
  func.func @transform_0(%arg0: i32) -> (i32, i32, i32) {
    %c0_i32 = arith.constant 0 : i32
    %c0_i32_0 = arith.constant 0 : i32
    %c0_i32_1 = arith.constant 0 : i32
    return %arg0, %c0_i32, %c0_i32_0 : i32, i32, i32
  }
  func.func @transform_1(%arg0: i32) -> (i32, i32, i32) {
    %c0_i32 = arith.constant 0 : i32
    %c0_i32_0 = arith.constant 0 : i32
    %c0_i32_1 = arith.constant 0 : i32
    return %arg0, %c0_i32, %c0_i32_0 : i32, i32, i32
  }
}

</mosaic_0001>

<llo_original>
// kernel: get_gradient_nopadding.1
$region0: #{get_gradient_nopadding.1}
  #allocation0 [shape = 'u32[]', space=smem, size = 0x4, offset = 0x4, fixed_abs, tag = 'smem constant byte address 0x4 - core index']
  #allocation1 [shape = 'u32[144,128]{1,0:T(1,128)}', space=vmem, size = 0x12000, scoped, tag = 'internal scratch']
  %s0 = inlined_call_operand.vmem [shape: f32[2,18,18], index: 0, kind: input, shape index: {}]
  %s1 = inlined_call_operand.hbm [shape: f32[2,16,16], index: 1, kind: output, shape index: {}]
  %s2 = sld [smem:[#allocation0]]
  $region37: #{get_gradient_nopadding.1} parent=0
    _
  %s4 = ssub.s32 1, %s2
  %s5 = scalar_select 0, %s4, %s2
  $region1: #{get_gradient_nopadding.1} parent=0
    #allocation2 [shape = 'u8[16384]{0}', space=vmem, size = 0x4000, scoped, tag = 'output window, operand 0']
    #allocation3 [shape = 's32[2]{0}', space=sflag, size = 0x8, scoped, tag = 'scoped memory for get_gradient_nopadding.1']
    %6 = vsyncpa [#allocation3], 0
    %s7 = scalar_lea.sflag [#allocation3], 1
    %8 = vsyncpa %s7, 0
    loop: start=0, step=1, limit=4
    $region2: #{get_gradient_nopadding.1} parent=1 // loop_pre_header
      _
    $region3: #{get_gradient_nopadding.1} parent=1 // loop_header
      %s10 = sphi 0, %s14
      %p11 = scmp.ge.s32.totalorder %s10, 4
      %s20 = sphi 0, %s22
      %s23 = sphi 0, %s20
      %s24 = sphi 0, %s23
      %s40 = sphi 0, %s24
      %s46 = sphi 0, %s48
      %s49 = sphi 0, %s46
      %s50 = sphi 0, %s49
      %s66 = sphi 0, %s50
    $region4: #{get_gradient_nopadding.1} parent=1 // loop_header_branch
      %13 = sbr.rel (%p11) target = $region8
    $region5: #{get_gradient_nopadding.1} parent=1 // loop_body
      %s15 = ssub.s32 %s10, 1
      %s16 = ssub.s32 %s10, 2
      %s17 = sadd.s32 %s10, 1
      %s18 = ssub.s32 %s10, %s17
      %p19 = scmp.eq.s32.totalorder %s18, 0
      %s21 = sadd.s32 %s20, 1
      %s22 = scalar_select %p19, %s20, %s21
      %p25 = pneg %p19
      %p26 = scmp.eq.s32.totalorder %s10, 1
      %p27 = por %p25, %p26
      %p28 = scmp.ne.s32.totalorder %s20, %s23
      %p29 = scmp.eq.s32.totalorder %s10, 0
      %p30 = por %p28, %p29
      %p31 = scmp.ne.s32.totalorder %s20, %s23
      %p32 = scmp.eq.s32.totalorder %s15, 1
      %p33 = por %p31, %p32
      %p34 = scmp.ne.s32.totalorder %s23, %s24
      %p35 = scmp.eq.s32.totalorder %s15, 0
      %p36 = por %p34, %p35
      %p37 = scmp.ne.s32.totalorder %s23, %s24
      %p38 = scmp.eq.s32.totalorder %s16, 1
      %p39 = por %p37, %p38
      %p41 = scmp.ne.s32.totalorder %s24, %s40
      %p42 = scmp.eq.s32.totalorder %s16, 0
      %p43 = por %p41, %p42
      %s44 = ssub.s32 %s10, %s17
      %p45 = scmp.eq.s32.totalorder %s44, 0
      %s47 = sadd.s32 %s46, 1
      %s48 = scalar_select %p45, %s46, %s47
      %p51 = pneg %p45
      %p52 = scmp.eq.s32.totalorder %s10, 1
      %p53 = por %p51, %p52
      %p54 = scmp.ne.s32.totalorder %s46, %s49
      %p55 = scmp.eq.s32.totalorder %s10, 0
      %p56 = por %p54, %p55
      %p57 = scmp.ne.s32.totalorder %s46, %s49
      %p58 = scmp.eq.s32.totalorder %s15, 1
      %p59 = por %p57, %p58
      %p60 = scmp.ne.s32.totalorder %s49, %s50
      %p61 = scmp.eq.s32.totalorder %s15, 0
      %p62 = por %p60, %p61
      %p63 = scmp.ne.s32.totalorder %s49, %s50
      %p64 = scmp.eq.s32.totalorder %s16, 1
      %p65 = por %p63, %p64
      %p67 = scmp.ne.s32.totalorder %s50, %s66
      %p68 = scmp.eq.s32.totalorder %s16, 0
      %p69 = por %p67, %p68
      %p70 = scmp.le.s32.totalorder 1, %s10
      %p71 = scmp.lt.s32.totalorder %s10, 3
      %p72 = pnand %p70, %p71
      %p73 = pneg %p72
      // Predicated region
      $region9: #{get_gradient_nopadding.1} parent=5 // pred_check
        _
      $region10: #{get_gradient_nopadding.1} parent=5 // pred_check_branch
        %75 = sbr.rel (%p72) target = $region12
      $region11: #{get_gradient_nopadding.1} parent=5 // pred_region
        %s76 = ssub.s32 %s10, 1
      $region12: #{get_gradient_nopadding.1} parent=5 // pred_fallthru
        _
      %p77 = scmp.lt.s32.totalorder %s10, 2
      // Predicated region
      $region13: #{get_gradient_nopadding.1} parent=5 // pred_check
        %p78 = pneg %p77
      $region14: #{get_gradient_nopadding.1} parent=5 // pred_check_branch
        %80 = sbr.rel (%p78) target = $region16
      $region15: #{get_gradient_nopadding.1} parent=5 // pred_region
        // Predicated region
        $region17: #{get_gradient_nopadding.1} parent=15 // pred_check
          %p81 = pneg %p30
        $region18: #{get_gradient_nopadding.1} parent=15 // pred_check_branch
          %83 = sbr.rel (%p81) target = $region20
        $region19: #{get_gradient_nopadding.1} parent=15 // pred_region
          %p84 = scmp.lt.s32.totalorder %s10, 1
          %s85 = scalar_select %p84, %s10, 1
          %s86 = smul.addr %s85, 3
          %s87 = smul.addr %s86, 8
          %s88 = scalar_lea.vmem %s0, %s87
        $region20: #{get_gradient_nopadding.1} parent=15 // pred_fallthru
          _
      $region16: #{get_gradient_nopadding.1} parent=5 // pred_fallthru
        _
      %p89 = scmp.le.s32.totalorder 1, %s10
      %p90 = scmp.lt.s32.totalorder %s10, 3
      %p91 = pnand %p89, %p90
      %p92 = pneg %p91
      // Predicated region
      $region21: #{get_gradient_nopadding.1} parent=5 // pred_check
        _
      $region22: #{get_gradient_nopadding.1} parent=5 // pred_check_branch
        %94 = sbr.rel (%p91) target = $region24
      $region23: #{get_gradient_nopadding.1} parent=5 // pred_region
        %s95 = ssub.s32 %s10, 1
        %p96 = scmp.lt.s32.totalorder %s15, 1
        %s97 = scalar_select %p96, %s15, 1
        %s98 = smul.addr %s97, 3
        %s99 = smul.addr %s98, 8
        %s100 = scalar_lea.vmem %s0, %s99
        %p101 = pneg %p36
        %p102 = pneg %p33
        %p103 = pneg %p62
        %p104 = pneg %p59
        %s105 = sand.u32 %s49, 1
        %s106 = scalar_lea.sflag [#allocation3], %s105
        %s107 = sand.u32 %s49, 1
        %s108 = smul.addr %s107, 16
        %s109 = scalar_lea.vmem [#allocation2], %s108
        %p110 = scmp.lt.s32.totalorder %s15, 1
        %s111 = scalar_select %p110, %s15, 1
        %s112 = smul.addr %s111, 3
        %s113 = smul.addr %s112, 8
        %s114 = scalar_lea.vmem %s0, %s113
        %v115 = vld [vmem:[%s114] sm:$0xff]
        %v116 = vld [vmem:[%s114 + $0x8] sm:$0xff]
        %v117 = vld [vmem:[%s114 + $0x10] sm:$0x3]
        %vm120 = vcmask 1041408
        %v121 = vrot.slane %v115, 6
        %v122 = vrot.slane %v116, 6
        %v123 = vsel %vm120, %v121, %v122
        %v127 = vsub.f32 %v115, %v121
        %v128 = vsub.f32 %v116, %v123
        %v129 = vsub.f32 %v117, %v122
        %131 = vrot.lane.b32.xlu0 %v115, 2
        %v132 = vpop.permute.xlu0 %131
        %133 = vrot.lane.b32.xlu0 %v116, 2
        %v134 = vpop.permute.xlu0 %133
        %135 = vrot.lane.b32.xlu0 %v117, 2
        %v136 = vpop.permute.xlu0 %135
        %v140 = vsub.f32 %v115, %v132
        %v141 = vsub.f32 %v116, %v134
        %v142 = vsub.f32 %v117, %v136
        %v143 = vmul.f32 %v127, %v127
        %v144 = vmul.f32 %v128, %v128
        %v145 = vmul.f32 %v129, %v129
        %v146 = vmul.f32 %v140, %v140
        %v147 = vmul.f32 %v141, %v141
        %v148 = vmul.f32 %v142, %v142
        %vm152 = vcmask 1040384
        %v153 = vrot.slane %v146, 7
        %v154 = vrot.slane %v147, 7
        %v155 = vsel %vm152, %v153, %v154
        %v156 = vrot.slane %v148, 7
        %v157 = vsel %vm152, %v154, %v156
        %158 = vrot.lane.b32.xlu0 %v153, 127
        %v159 = vpop.permute.xlu0 %158
        %160 = vrot.lane.b32.xlu0 %v155, 127
        %v161 = vpop.permute.xlu0 %160
        %162 = vrot.lane.b32.xlu0 %v157, 127
        %v163 = vpop.permute.xlu0 %162
        %v167 = vadd.f32 %v143, %v159
        %v168 = vadd.f32 %v144, %v161
        %v169 = vadd.f32 %v145, %v163
        %v170 = vadd.f32 %v167, 1e-06
        %v171 = vadd.f32 %v168, 1e-06
        %v172 = vadd.f32 %v169, 1e-06
        %v173 = vrsqrt.pop %v170
        %v174 = vmul.f32 %v170, %v173
        %vm175 = vcmp.eq.f32.partialorder %v170, inf
        %v176 = vsel %vm175, %v170, %v174
        %vm177 = vcmp.eq.f32.partialorder %v170, 0.0
        %v178 = vand.u32 %v170, 2147483648
        %v179 = vsel %vm177, %v178, %v176
        %v180 = vrsqrt.pop %v171
        %v181 = vmul.f32 %v171, %v180
        %vm182 = vcmp.eq.f32.partialorder %v171, inf
        %v183 = vsel %vm182, %v171, %v181
        %vm184 = vcmp.eq.f32.partialorder %v171, 0.0
        %v185 = vand.u32 %v171, 2147483648
        %v186 = vsel %vm184, %v185, %v183
        %v187 = vrsqrt.pop %v172
        %v188 = vmul.f32 %v172, %v187
        %vm189 = vcmp.eq.f32.partialorder %v172, inf
        %v190 = vsel %vm189, %v172, %v188
        %vm191 = vcmp.eq.f32.partialorder %v172, 0.0
        %v192 = vand.u32 %v172, 2147483648
        %v193 = vsel %vm191, %v192, %v190
        %197 = vrot.lane.b32.xlu0 %v179, 127
        %v198 = vpop.permute.xlu0 %197
        %199 = vrot.lane.b32.xlu0 %v186, 127
        %v200 = vpop.permute.xlu0 %199
        %201 = vrot.lane.b32.xlu0 %v193, 127
        %v202 = vpop.permute.xlu0 %201
        %vm206 = vcmask 130050
        %207 = vst.msk [vmem:[%s109 - $0x2] sm:$0xfc] %vm206, %v198
        %vm208 = vcmask 130048
        %209 = vst.msk [vmem:[%s109 + $0x6] sm:$0xff] %vm208, %v200
        %vm210 = vcmask 123904
        %211 = vst.msk [vmem:[%s109 + $0xe] sm:$0x3] %vm210, %v202
        %s212 = sand.u32 %s49, 1
        %s213 = scalar_lea.sflag [#allocation3], %s212
        %s214 = sand.u32 %s49, 1
        %s215 = smul.addr %s214, 16
        %s216 = scalar_lea.vmem [#allocation2], %s215
        // Predicated region
        $region25: #{get_gradient_nopadding.1} parent=23 // pred_check
          %p217 = pneg %p59
        $region26: #{get_gradient_nopadding.1} parent=23 // pred_check_branch
          %219 = sbr.rel (%p217) target = $region28
        $region27: #{get_gradient_nopadding.1} parent=23 // pred_region
          %s221 = ssub.s32 256, 256
          %222 = vsyncadd %s213, %s221
          %s223 = smul.addr %s15, 2
          %s224 = smul.addr %s223, 128
          %s225 = scalar_lea.hbm %s1, %s224
          %s226 = sshll.u32 %s216, 4
          %s227 = int_to_ptr.vmem [resolvable:$true] %s226
          %232 = dma.vmem_to_hbm [thread:$0]  %s227, 256, %s225, %s213, 128, 128, 8
        $region28: #{get_gradient_nopadding.1} parent=23 // pred_fallthru
          _
      $region24: #{get_gradient_nopadding.1} parent=5 // pred_fallthru
        _
      %p233 = scmp.le.s32.totalorder 2, %s10
      // Predicated region
      $region29: #{get_gradient_nopadding.1} parent=5 // pred_check
        %p234 = pneg %p233
      $region30: #{get_gradient_nopadding.1} parent=5 // pred_check_branch
        %236 = sbr.rel (%p234) target = $region32
      $region31: #{get_gradient_nopadding.1} parent=5 // pred_region
        %s237 = ssub.s32 %s10, 2
        // Predicated region
        $region33: #{get_gradient_nopadding.1} parent=31 // pred_check
          %p238 = pneg %p65
        $region34: #{get_gradient_nopadding.1} parent=31 // pred_check_branch
          %240 = sbr.rel (%p238) target = $region36
        $region35: #{get_gradient_nopadding.1} parent=31 // pred_region
          %s241 = sand.u32 %s50, 1
          %s242 = scalar_lea.sflag [#allocation3], %s241
          %s243 = sand.u32 %s50, 1
          %s244 = smul.addr %s243, 16
          %s245 = scalar_lea.vmem [#allocation2], %s244
          %246 = dma.done %s242, 256
        $region36: #{get_gradient_nopadding.1} parent=31 // pred_fallthru
          _
      $region32: #{get_gradient_nopadding.1} parent=5 // pred_fallthru
        _
    $region6: #{get_gradient_nopadding.1} parent=1 // loop_footer
      %s14 = sadd.s32 1, %s10
    $region7: #{get_gradient_nopadding.1} parent=1 // loop_footer_branch
      %9 = sbr.rel target = $region3
    $region8: #{get_gradient_nopadding.1} parent=1 // loop_exit
      _
    %247 = vsyncpa [#allocation3], 1
    %s248 = scalar_lea.sflag [#allocation3], 1
    %249 = vsyncpa %s248, 1

</llo_original>
